<compile_context>
chip_gen: v7x
topology: tpu7x:2x2x1
jax: 0.10.0
libtpu: 0.0.40
codegen_flags: <defaults>
</compile_context>

<pallas_src>
import jax
import jax.numpy as jnp
import numpy as np
from jax import lax
from jax.experimental import pallas as pl
from jax.experimental.pallas import tpu as pltpu

H1, H2 = 400, 300


def _round_up(n, m):
    return ((n + m - 1) // m) * m


def _cdiv(a, b):
    return (a + b - 1) // b


def critic_kernel(x_ref, a_ref, w1_ref, b1_ref, w2x_ref, w2a_ref, b2_ref,
                  w3_ref, b3_ref, o_ref):
    # ---- fc1 + ReLU: MXU matmul (bf16 in, f32 acc); bias/ReLU in f32 on the VPU.
    h1 = jnp.dot(x_ref[...].astype(jnp.bfloat16), w1_ref[...],
                 preferred_element_type=jnp.float32)
    h1 = jnp.maximum(h1 + b1_ref[...], 0.0)

    # ---- fc2 on concat([h1, a]) == h1 @ W2x + a @ W2a.
    # h1 part is a real (K=400) matmul -> MXU.
    h2 = jnp.dot(h1.astype(jnp.bfloat16), w2x_ref[...],
                 preferred_element_type=jnp.float32)
    a_f32 = a_ref[...]
    A = a_ref.shape[1]
    if A < 8:
        # Tiny action dim: rank-1 broadcast multiply-adds on the VPU instead of
        # a degenerate K=A MXU pass.  (Static Python loop, A is tiny.)
        for k in range(A):
            h2 = h2 + a_f32[:, k:k + 1] * w2a_ref[k:k + 1, :]
    else:
        # Larger action dim: one MXU pass (f32 so it matches the reference).
        h2 = h2 + jnp.dot(a_f32, w2a_ref[...],
                          preferred_element_type=jnp.float32)
    h2 = jnp.maximum(h2 + b2_ref[...], 0.0)

    # ---- fc3 (1 unit): contract the 300-feature axis with the batch landing on
    # the lane axis -> lane-dense (1, tb) row, no masked single-lane stores.
    #   (1, 300) x (tb, 300)^T -> (1, tb) on the MXU (same contraction pattern
    #   as the flash-attention q@k^T einsum).
    q_row = lax.dot_general(w3_ref[...], h2,
                            dimension_numbers=(((1,), (1,)), ((), ())),
                            preferred_element_type=jnp.float32)
    q_row = q_row + b3_ref[0, 0]
    o_ref[...] = q_row.reshape(o_ref.shape).astype(o_ref.dtype)


def critic_forward(x, a, params, *, block_b=2048):
    """x: (B, S) float32, a: (B, A) float32 -> (B, 1) float32."""
    w1, b1, w2x, w2a, b2, w3_row, b3 = params
    B, S = x.shape
    A = a.shape[1]

    # ---- batch tiling -----------------------------------------------------
    # * tiles are multiples of 16 (bf16 vreg tile is (16,128)).
    # * B > 64  -> even number (>=2) of grid steps so v7x's 2 TCs both work.
    # * block_b=2048 amortizes per-step overhead for big batches (v5e/v6e).
    B16 = _round_up(B, 16)
    if B16 <= 64:
        steps = 1
    else:
        steps = max(2, 2 * _cdiv(B16, 2 * block_b))
    tb = _round_up(_cdiv(B16, steps), 16)
    b_pad = steps * tb

    # Host-side pad only when B is not already a tile multiple (common DDPG
    # batch sizes 64/128/256/... take the zero-copy path).
    if b_pad != B:
        x = jnp.pad(x, ((0, b_pad - B), (0, 0)))
        a = jnp.pad(a, ((0, b_pad - B), (0, 0)))

    def resident(shape):
        # Full-array block with a constant index_map -> stays VMEM-resident
        # across all batch blocks (Pallas skips the re-DMA).
        return pl.BlockSpec(shape, lambda i: (0, 0),
                            memory_space=pltpu.MemorySpace.VMEM)

    flops = 2 * b_pad * (S * H1 + H1 * H2 + A * H2 + H2)
    bytes_accessed = (b_pad * (S + A + 1) * 4
                      + w1.size * w1.dtype.itemsize
                      + w2x.size * w2x.dtype.itemsize
                      + w2a.size * 4 + b1.size * 4 + b2.size * 4
                      + w3_row.size * 4 + 4)

    out = pl.pallas_call(
        critic_kernel,
        out_shape=jax.ShapeDtypeStruct((steps, 1, tb), jnp.float32),
        grid=(steps,),
        in_specs=[
            pl.BlockSpec((tb, S), lambda i: (i, 0)),    # x  (blocked over batch)
            pl.BlockSpec((tb, A), lambda i: (i, 0)),    # a  (blocked over batch)
            resident((S, H1)),                          # W1  (bf16, MXU)
            resident((1, H1)),                          # b1
            resident((H1, H2)),                         # W2x (bf16, MXU)
            resident((A, H2)),                          # W2a (f32, VPU path)
            resident((1, H2)),                          # b2
            resident((1, H2)),                          # W3 as a (1, 300) row
            pl.BlockSpec((1, 1), lambda i: (0, 0),      # b3 scalar in SMEM
                         memory_space=pltpu.MemorySpace.SMEM),
        ],
        # Lane-dense output: one (1, 1, tb) row per batch block.
        out_specs=pl.BlockSpec((1, 1, tb), lambda i: (i, 0, 0)),
        compiler_params=pltpu.CompilerParams(
            dimension_semantics=("parallel",)),
        cost_estimate=pl.CostEstimate(flops=flops, transcendentals=0,
                                      bytes_accessed=bytes_accessed),
    )(x, a, w1, b1, w2x, w2a, b2, w3_row, b3)

    q = out.reshape(b_pad, 1)        # pure reshape: block-major == batch-major
    return q if b_pad == B else q[:B]


def init_critic_params(key, state_size, action_size):
    """Mirrors the PyTorch module's init_weights().  Weights are pre-transposed
    to (in, out), W2 split into state/action parts, W3 stored as a row, and the
    two big MXU operands pre-cast to bf16 once (not per call)."""
    k1w, k1b, k2w, k2b, k3w, k3b = jax.random.split(key, 6)
    # fc1: fan-in init with fan_in = state_size
    v1 = 1.0 / np.sqrt(state_size)
    w1 = jax.random.uniform(k1w, (state_size, H1), jnp.float32, -v1, v1)
    b1 = jax.random.uniform(k1b, (1, H1), jnp.float32, -v1, v1)
    # fc2: fan-in init with fan_in = 400 + action_size
    v2 = 1.0 / np.sqrt(H1 + action_size)
    w2 = jax.random.uniform(k2w, (H1 + action_size, H2), jnp.float32, -v2, v2)
    w2x, w2a = w2[:H1, :], w2[H1:, :]
    b2 = jax.random.uniform(k2b, (1, H2), jnp.float32, -v2, v2)
    # fc3: uniform(-0.003, 0.003) weights, default bias init (1/sqrt(300))
    v3b = 1.0 / np.sqrt(H2)
    w3_row = jax.random.uniform(k3w, (1, H2), jnp.float32, -0.003, 0.003)
    b3 = jax.random.uniform(k3b, (1, 1), jnp.float32, -v3b, v3b)
    return (w1.astype(jnp.bfloat16), b1, w2x.astype(jnp.bfloat16), w2a, b2,
            w3_row, b3)


def critic_ref(x, a, params):
    """Pure-JAX reference mirroring the kernel's math (same bf16 MXU casts).
    Note: W1/W2x are bf16, a small (~1e-3) deviation from the f32 PyTorch
    reference -- acceptable for a DDPG critic forward pass."""
    w1, b1, w2x, w2a, b2, w3_row, b3 = params
    h1 = jnp.dot(x.astype(jnp.bfloat16), w1, preferred_element_type=jnp.float32)
    h1 = jnp.maximum(h1 + b1, 0.0)
    h2 = jnp.dot(h1.astype(jnp.bfloat16), w2x, preferred_element_type=jnp.float32)
    h2 = h2 + a @ w2a
    h2 = jnp.maximum(h2 + b2, 0.0)
    return jnp.sum(h2 * w3_row, axis=-1, keepdims=True) + b3[0, 0]


if __name__ == "__main__":
    key = jax.random.PRNGKey(0)
    kp, kx, ka, kx2, ka2 = jax.random.split(key, 5)

    # DoubleInvertedPendulum-like shapes: state dim 11, 1 action.
    STATE, ACTION = 11, 1
    params = init_critic_params(kp, STATE, ACTION)

    # Small batch (B=2): single grid step, padded to the 16-row tile.
    B = 2
    x = jax.random.normal(kx, (B, STATE), jnp.float32)
    a = jax.random.normal(ka, (B, ACTION), jnp.float32)
    q = jax.block_until_ready(critic_forward(x, a, params))
    np.testing.assert_allclose(np.asarray(q), np.asarray(critic_ref(x, a, params)),
                               rtol=1e-3, atol=1e-3)
    assert q.shape == (B, 1)

    # Tile-multiple batch (B=160): zero-copy path, 2 parallel grid steps.
    B2 = 160
    x2 = jax.random.normal(kx2, (B2, STATE), jnp.float32)
    a2 = jax.random.normal(ka2, (B2, ACTION), jnp.float32)
    q2 = jax.block_until_ready(critic_forward(x2, a2, params))
    np.testing.assert_allclose(np.asarray(q2), np.asarray(critic_ref(x2, a2, params)),
                               rtol=1e-3, atol=1e-3)
    assert q2.shape == (B2, 1)

    print("KERNEL_OK")
</pallas_src>

<mosaic_0001>
module attributes {stable_mosaic.version = 11 : i64} {
  func.func @critic_kernel(%arg0: i32, %arg1: memref<16x11xf32, #tpu.memory_space<vmem>>, %arg2: memref<16x1xf32, #tpu.memory_space<vmem>>, %arg3: memref<11x400xbf16, #tpu.memory_space<vmem>>, %arg4: memref<1x400xf32, #tpu.memory_space<vmem>>, %arg5: memref<400x300xbf16, #tpu.memory_space<vmem>>, %arg6: memref<1x300xf32, #tpu.memory_space<vmem>>, %arg7: memref<1x300xf32, #tpu.memory_space<vmem>>, %arg8: memref<1x300xf32, #tpu.memory_space<vmem>>, %arg9: memref<1x1xf32, #tpu.memory_space<smem>>, %arg10: memref<1x1x16xf32, #tpu.memory_space<vmem>>) attributes {dimension_semantics = [#tpu.dimension_semantics<parallel>], iteration_bounds = array<i64: 1>, scalar_prefetch = 0 : i64, scratch_operands = 0 : i64, tpu.core_type = #tpu.core_type<tc>, window_params = [{transform_indices = @transform_0, window_bounds = array<i64: 16, 11>}, {transform_indices = @transform_1, window_bounds = array<i64: 16, 1>}, {pipeline_mode = #tpu.pipeline_mode<synchronous>, transform_indices = @transform_2, window_bounds = array<i64: 11, 400>}, {pipeline_mode = #tpu.pipeline_mode<synchronous>, transform_indices = @transform_3, window_bounds = array<i64: 1, 400>}, {pipeline_mode = #tpu.pipeline_mode<synchronous>, transform_indices = @transform_4, window_bounds = array<i64: 400, 300>}, {pipeline_mode = #tpu.pipeline_mode<synchronous>, transform_indices = @transform_5, window_bounds = array<i64: 1, 300>}, {pipeline_mode = #tpu.pipeline_mode<synchronous>, transform_indices = @transform_6, window_bounds = array<i64: 1, 300>}, {pipeline_mode = #tpu.pipeline_mode<synchronous>, transform_indices = @transform_7, window_bounds = array<i64: 1, 300>}, {transform_indices = @transform_8, window_bounds = array<i64: 1, 1>}, {transform_indices = @transform_9, window_bounds = array<i64: 1, 1, 16>}]} {
    %c0 = arith.constant 0 : index
    %c0_0 = arith.constant 0 : index
    %0 = vector.load %arg1[%c0, %c0_0] : memref<16x11xf32, #tpu.memory_space<vmem>>, vector<16x11xf32>
    %1 = arith.truncf %0 : vector<16x11xf32> to vector<16x11xbf16>
    %c0_1 = arith.constant 0 : index
    %c0_2 = arith.constant 0 : index
    %2 = vector.load %arg3[%c0_1, %c0_2] : memref<11x400xbf16, #tpu.memory_space<vmem>>, vector<11x400xbf16>
    %cst = arith.constant dense<0.000000e+00> : vector<16x400xf32>
    %3 = tpu.matmul %1, %2, %cst {dimension_numbers = #tpu.dot_dimension_numbers<[1], [0], [0], [1], [0, 0, 1, 1], [], []>} : vector<16x11xbf16>, vector<11x400xbf16>, vector<16x400xf32> -> vector<16x400xf32>
    %c0_3 = arith.constant 0 : index
    %c0_4 = arith.constant 0 : index
    %4 = vector.load %arg4[%c0_3, %c0_4] : memref<1x400xf32, #tpu.memory_space<vmem>>, vector<1x400xf32>
    %5 = vector.broadcast %4 : vector<1x400xf32> to vector<16x400xf32>
    %6 = arith.addf %3, %5 : vector<16x400xf32>
    %cst_5 = arith.constant 0.000000e+00 : f32
    %7 = vector.broadcast %cst_5 : f32 to vector<16x400xf32>
    %8 = arith.maximumf %6, %7 : vector<16x400xf32>
    %9 = arith.truncf %8 : vector<16x400xf32> to vector<16x400xbf16>
    %c0_6 = arith.constant 0 : index
    %c0_7 = arith.constant 0 : index
    %10 = vector.load %arg5[%c0_6, %c0_7] : memref<400x300xbf16, #tpu.memory_space<vmem>>, vector<400x300xbf16>
    %cst_8 = arith.constant dense<0.000000e+00> : vector<16x300xf32>
    %11 = tpu.matmul %9, %10, %cst_8 {dimension_numbers = #tpu.dot_dimension_numbers<[1], [0], [0], [1], [0, 0, 1, 1], [], []>} : vector<16x400xbf16>, vector<400x300xbf16>, vector<16x300xf32> -> vector<16x300xf32>
    %c0_9 = arith.constant 0 : index
    %c0_10 = arith.constant 0 : index
    %12 = vector.load %arg2[%c0_9, %c0_10] : memref<16x1xf32, #tpu.memory_space<vmem>>, vector<16x1xf32>
    %c0_11 = arith.constant 0 : index
    %c0_12 = arith.constant 0 : index
    %13 = vector.load %arg6[%c0_11, %c0_12] : memref<1x300xf32, #tpu.memory_space<vmem>>, vector<1x300xf32>
    %14 = vector.broadcast %12 : vector<16x1xf32> to vector<16x300xf32>
    %15 = vector.broadcast %13 : vector<1x300xf32> to vector<16x300xf32>
    %16 = arith.mulf %14, %15 : vector<16x300xf32>
    %17 = arith.addf %11, %16 : vector<16x300xf32>
    %c0_13 = arith.constant 0 : index
    %c0_14 = arith.constant 0 : index
    %18 = vector.load %arg7[%c0_13, %c0_14] : memref<1x300xf32, #tpu.memory_space<vmem>>, vector<1x300xf32>
    %19 = vector.broadcast %18 : vector<1x300xf32> to vector<16x300xf32>
    %20 = arith.addf %17, %19 : vector<16x300xf32>
    %cst_15 = arith.constant 0.000000e+00 : f32
    %21 = vector.broadcast %cst_15 : f32 to vector<16x300xf32>
    %22 = arith.maximumf %20, %21 : vector<16x300xf32>
    %c0_16 = arith.constant 0 : index
    %c0_17 = arith.constant 0 : index
    %23 = vector.load %arg8[%c0_16, %c0_17] : memref<1x300xf32, #tpu.memory_space<vmem>>, vector<1x300xf32>
    %cst_18 = arith.constant dense<0.000000e+00> : vector<1x16xf32>
    %24 = tpu.matmul %23, %22, %cst_18 {dimension_numbers = #tpu.dot_dimension_numbers<[1], [1], [0], [0], [0, 0, 1, 0], [], []>} : vector<1x300xf32>, vector<16x300xf32>, vector<1x16xf32> -> vector<1x16xf32>
    %c0_19 = arith.constant 0 : index
    %c0_20 = arith.constant 0 : index
    %25 = memref.load %arg9[%c0_19, %c0_20] : memref<1x1xf32, #tpu.memory_space<smem>>
    %26 = vector.broadcast %25 : f32 to vector<1x16xf32>
    %27 = arith.addf %24, %26 : vector<1x16xf32>
    %28 = vector.shape_cast %27 : vector<1x16xf32> to vector<1x1x16xf32>
    %c0_21 = arith.constant 0 : index
    %c0_22 = arith.constant 0 : index
    %c0_23 = arith.constant 0 : index
    %29 = vector.load %arg10[%c0_21, %c0_22, %c0_23] : memref<1x1x16xf32, #tpu.memory_space<vmem>>, vector<1x1x16xf32>
    tpu.vector_store %arg10[%c0_21, %c0_22, %c0_23], %28 {strides = array<i32>} : memref<1x1x16xf32, #tpu.memory_space<vmem>>, vector<1x1x16xf32>,
    return
  }
  func.func @transform_0(%arg0: i32) -> (i32, i32) {
    %c0_i32 = arith.constant 0 : i32
    %c0_i32_0 = arith.constant 0 : i32
    return %arg0, %c0_i32 : i32, i32
  }
  func.func @transform_1(%arg0: i32) -> (i32, i32) {
    %c0_i32 = arith.constant 0 : i32
    %c0_i32_0 = arith.constant 0 : i32
    return %arg0, %c0_i32 : i32, i32
  }
  func.func @transform_2(%arg0: i32) -> (i32, i32) {
    %c0_i32 = arith.constant 0 : i32
    %c0_i32_0 = arith.constant 0 : i32
    %c0_i32_1 = arith.constant 0 : i32
    return %c0_i32, %c0_i32_0 : i32, i32
  }
  func.func @transform_3(%arg0: i32) -> (i32, i32) {
    %c0_i32 = arith.constant 0 : i32
    %c0_i32_0 = arith.constant 0 : i32
    %c0_i32_1 = arith.constant 0 : i32
    return %c0_i32, %c0_i32_0 : i32, i32
  }
  func.func @transform_4(%arg0: i32) -> (i32, i32) {
    %c0_i32 = arith.constant 0 : i32
    %c0_i32_0 = arith.constant 0 : i32
    %c0_i32_1 = arith.constant 0 : i32
    return %c0_i32, %c0_i32_0 : i32, i32
  }
  func.func @transform_5(%arg0: i32) -> (i32, i32) {
    %c0_i32 = arith.constant 0 : i32
    %c0_i32_0 = arith.constant 0 : i32
    %c0_i32_1 = arith.constant 0 : i32
    return %c0_i32, %c0_i32_0 : i32, i32
  }
  func.func @transform_6(%arg0: i32) -> (i32, i32) {
    %c0_i32 = arith.constant 0 : i32
    %c0_i32_0 = arith.constant 0 : i32
    %c0_i32_1 = arith.constant 0 : i32
    return %c0_i32, %c0_i32_0 : i32, i32
  }
  func.func @transform_7(%arg0: i32) -> (i32, i32) {
    %c0_i32 = arith.constant 0 : i32
    %c0_i32_0 = arith.constant 0 : i32
    %c0_i32_1 = arith.constant 0 : i32
    return %c0_i32, %c0_i32_0 : i32, i32
  }
  func.func @transform_8(%arg0: i32) -> (i32, i32) {
    %c0_i32 = arith.constant 0 : i32
    %c0_i32_0 = arith.constant 0 : i32
    %c0_i32_1 = arith.constant 0 : i32
    return %c0_i32, %c0_i32_0 : i32, i32
  }
  func.func @transform_9(%arg0: i32) -> (i32, i32, i32) {
    %c0_i32 = arith.constant 0 : i32
    %c0_i32_0 = arith.constant 0 : i32
    %c0_i32_1 = arith.constant 0 : i32
    return %arg0, %c0_i32, %c0_i32_0 : i32, i32, i32
  }
}

</mosaic_0001>

<llo_original>
// kernel: tpu_custom_call.1
$region0: #{tpu_custom_call.1}
  #allocation0 [shape = 'u32[]', space=smem, size = 0x4, offset = 0x4, fixed_abs, tag = 'smem constant byte address 0x4 - core index']
  #allocation1 [shape = 'u32[144,128]{1,0:T(1,128)}', space=vmem, size = 0x12000, scoped, tag = 'internal scratch']
  #allocation2 [shape = 'f32[1,1]{1,0:T(1,128)S(6)}', space=smem, size = 0x200, scoped, tag = 'scoped memory for tpu_custom_call.1']
  %s0 = inlined_call_operand.vmem [shape: f32[16,11], index: 0, kind: input, shape index: {}]
  %s1 = inlined_call_operand.vmem [shape: f32[16,1], index: 1, kind: input, shape index: {}]
  %s2 = inlined_call_operand.hbm [shape: bf16[11,400], index: 2, kind: input, shape index: {}]
  %s3 = inlined_call_operand.vmem [shape: f32[1,400], index: 3, kind: input, shape index: {}]
  %s4 = inlined_call_operand.hbm [shape: bf16[400,300], index: 4, kind: input, shape index: {}]
  %s5 = inlined_call_operand.vmem [shape: f32[1,300], index: 5, kind: input, shape index: {}]
  %s6 = inlined_call_operand.vmem [shape: f32[1,300], index: 6, kind: input, shape index: {}]
  %s7 = inlined_call_operand.vmem [shape: f32[1,300], index: 7, kind: input, shape index: {}]
  %s8 = inlined_call_operand.<no memory space> [shape: f32[1,1], index: 8, kind: input, shape index: {}]
  %s9 = inlined_call_operand.hbm [shape: f32[1,1,16], index: 9, kind: output, shape index: {}]
  %s10 = sld [smem:[#allocation0]]
  $region54: #{tpu_custom_call.1} parent=0
    _
  %s12 = ssub.s32 1, %s10
  %s13 = scalar_select 0, %s12, %s10
  %14 = sst [smem:[#allocation2]] %s8
  $region1: #{tpu_custom_call.1} parent=0
    #allocation3 [shape = 'u8[16384]{0}', space=vmem, size = 0x4000, scoped, tag = 'input window, operand 2, single buffered']
    #allocation4 [shape = 's32[1]{0}', space=sflag, size = 0x4, scoped, tag = 'scoped memory for tpu_custom_call.1']
    #allocation5 [shape = 's32[1]{0}', space=sflag, size = 0x4, scoped, tag = 'scoped memory for tpu_custom_call.1']
    #allocation6 [shape = 'u8[307200]{0}', space=vmem, size = 0x4b000, scoped, tag = 'input window, operand 4, single buffered']
    #allocation7 [shape = 's32[1]{0}', space=sflag, size = 0x4, scoped, tag = 'scoped memory for tpu_custom_call.1']
    #allocation8 [shape = 'u8[512]{0}', space=vmem, size = 0x400, scoped, tag = 'output window, operand 0, single buffered']
    %15 = vsyncpa [#allocation4], 0
    %16 = vsyncpa [#allocation7], 0
    %17 = vsyncpa [#allocation5], 0
    // Predicated region
    $region2: #{tpu_custom_call.1} parent=1 // pred_check
      _
    $region3: #{tpu_custom_call.1} parent=1 // pred_check_branch
      %19 = sbr.rel (0) target = $region5
    $region4: #{tpu_custom_call.1} parent=1 // pred_region
      _
    $region5: #{tpu_custom_call.1} parent=1 // pred_fallthru
      _
    // Predicated region
    $region6: #{tpu_custom_call.1} parent=1 // pred_check
      _
    $region7: #{tpu_custom_call.1} parent=1 // pred_check_branch
      %21 = sbr.rel (0) target = $region9
    $region8: #{tpu_custom_call.1} parent=1 // pred_region
      _
    $region9: #{tpu_custom_call.1} parent=1 // pred_fallthru
      _
    // Predicated region
    $region10: #{tpu_custom_call.1} parent=1 // pred_check
      _
    $region11: #{tpu_custom_call.1} parent=1 // pred_check_branch
      %23 = sbr.rel (0) target = $region13
    $region12: #{tpu_custom_call.1} parent=1 // pred_region
      %s25 = ssub.s32 512, 512
      %26 = vsyncadd [#allocation4], %s25
      %s27 = sshll.u32 [#allocation3], 4
      %s28 = int_to_ptr.vmem [resolvable:$true] %s27
      %33 = dma.hbm_to_vmem [thread:$0]  %s2, 512, %s28, [#allocation4], 256, 256, 16
    $region13: #{tpu_custom_call.1} parent=1 // pred_fallthru
      _
    // Predicated region
    $region14: #{tpu_custom_call.1} parent=1 // pred_check
      _
    $region15: #{tpu_custom_call.1} parent=1 // pred_check_branch
      %35 = sbr.rel (0) target = $region17
    $region16: #{tpu_custom_call.1} parent=1 // pred_region
      _
    $region17: #{tpu_custom_call.1} parent=1 // pred_fallthru
      _
    // Predicated region
    $region18: #{tpu_custom_call.1} parent=1 // pred_check
      _
    $region19: #{tpu_custom_call.1} parent=1 // pred_check_branch
      %37 = sbr.rel (0) target = $region21
    $region20: #{tpu_custom_call.1} parent=1 // pred_region
      %s39 = ssub.s32 9600, 9600
      %40 = vsyncadd [#allocation7], %s39
      %s41 = sshll.u32 [#allocation6], 4
      %s42 = int_to_ptr.vmem [resolvable:$true] %s41
      %47 = dma.hbm_to_vmem [thread:$0]  %s4, 9600, %s42, [#allocation7], 192, 192, 12
    $region21: #{tpu_custom_call.1} parent=1 // pred_fallthru
      _
    // Predicated region
    $region22: #{tpu_custom_call.1} parent=1 // pred_check
      _
    $region23: #{tpu_custom_call.1} parent=1 // pred_check_branch
      %49 = sbr.rel (0) target = $region25
    $region24: #{tpu_custom_call.1} parent=1 // pred_region
      _
    $region25: #{tpu_custom_call.1} parent=1 // pred_fallthru
      _
    // Predicated region
    $region26: #{tpu_custom_call.1} parent=1 // pred_check
      _
    $region27: #{tpu_custom_call.1} parent=1 // pred_check_branch
      %51 = sbr.rel (0) target = $region29
    $region28: #{tpu_custom_call.1} parent=1 // pred_region
      _
    $region29: #{tpu_custom_call.1} parent=1 // pred_fallthru
      _
    // Predicated region
    $region30: #{tpu_custom_call.1} parent=1 // pred_check
      _
    $region31: #{tpu_custom_call.1} parent=1 // pred_check_branch
      %53 = sbr.rel (0) target = $region33
    $region32: #{tpu_custom_call.1} parent=1 // pred_region
      _
    $region33: #{tpu_custom_call.1} parent=1 // pred_fallthru
      _
    // Predicated region
    $region34: #{tpu_custom_call.1} parent=1 // pred_check
      _
    $region35: #{tpu_custom_call.1} parent=1 // pred_check_branch
      %55 = sbr.rel (0) target = $region37
    $region36: #{tpu_custom_call.1} parent=1 // pred_region
      _
    $region37: #{tpu_custom_call.1} parent=1 // pred_fallthru
      _
    // Predicated region
    $region38: #{tpu_custom_call.1} parent=1 // pred_check
      _
    $region39: #{tpu_custom_call.1} parent=1 // pred_check_branch
      %57 = sbr.rel (0) target = $region41
    $region40: #{tpu_custom_call.1} parent=1 // pred_region
      %58 = dma.done [#allocation4], 512
    $region41: #{tpu_custom_call.1} parent=1 // pred_fallthru
      _
    // Predicated region
    $region42: #{tpu_custom_call.1} parent=1 // pred_check
      _
    $region43: #{tpu_custom_call.1} parent=1 // pred_check_branch
      %60 = sbr.rel (0) target = $region45
    $region44: #{tpu_custom_call.1} parent=1 // pred_region
      %61 = dma.done [#allocation7], 9600
    $region45: #{tpu_custom_call.1} parent=1 // pred_fallthru
      _
    %v63 = vld [vmem:[%s0] sm:$0xff]
    %v64 = vld [vmem:[%s0 + $0x8] sm:$0xff]
    %v65 = vpack.c.bf16 %v64, %v63
    %v66 = vld [vmem:[#allocation3] sm:$0xff]
    %v67 = vld [vmem:[#allocation3 + $0x8] sm:$0xff]
    %v68 = vld [vmem:[#allocation3 + $0x10] sm:$0x33]
    %v69 = vld [vmem:[#allocation3 + $0x18] sm:$0x33]
    %v70 = vld [vmem:[%s3] sm:$0xf]
    %v72 = vlaneseq
    %v73 = vshrl.u32 %v72, 7
    %v74 = vsub.s32 0, %v73
    %v75 = vrot.slane %v70, %v74
    %v76 = vlaneseq
    %v77 = vshrl.u32 %v76, 7
    %v78 = vsub.s32 1, %v77
    %v79 = vrot.slane %v70, %v78
    %v80 = vlaneseq
    %v81 = vshrl.u32 %v80, 7
    %v82 = vsub.s32 2, %v81
    %v83 = vrot.slane %v70, %v82
    %v84 = vlaneseq
    %v85 = vshrl.u32 %v84, 7
    %v86 = vsub.s32 3, %v85
    %v87 = vrot.slane %v70, %v86
    %v96 = vunpack.c.l.b16 %v66
    %v97 = vunpack.c.h.b16 %v66
    %v98 = vunpack.c.l.b16 %v67
    %v99 = vunpack.c.h.b16 %v67
    %v100 = vunpack.c.l.b16 %v68
    %v101 = vunpack.c.h.b16 %v68
    %v102 = vunpack.c.l.b16 %v69
    %v103 = vunpack.c.h.b16 %v69
    %v104 = vpack.c.b16 %v100, %v96
    %v105 = vpack.c.b16 %v101, %v97
    %v106 = vpack.c.b16 %v102, %v98
    %v107 = vpack.c.b16 %v103, %v99
    %vm108 = vcmask 89088
    %v110 = vsel %vm108, %v65, 0
    %vm112 = vcmask 1044480
    %vm113 = vcmask 1045504
    %v114 = vsel %vm112, 4294967295, 65535
    %v115 = vsel %vm113, %v114, 0
    %v117 = vand.u32 %v104, %v115
    %v120 = vand.u32 %v105, %v115
    %v123 = vand.u32 %v106, %v115
    %v126 = vand.u32 %v107, %v115
    %128 = vmatprep.subr.bf16.mxu0 %v120
    %129 = vmatpush1.bf16.msra.mxu0 %v117
    %130 = vmatprep.subr.bf16.mxu0 0
    %131 = vmatpush1.bf16.msra.mxu0 0
    %132 = vmatprep.subr.bf16.mxu0 0
    %133 = vmatpush1.bf16.msra.mxu0 0
    %134 = vmatprep.subr.bf16.mxu0 0
    %135 = vmatpush1.bf16.msra.mxu0 0
    %136 = vmatprep.subr.bf16.mxu0 0
    %137 = vmatpush1.bf16.msra.mxu0 0
    %138 = vmatprep.subr.bf16.mxu0 0
    %139 = vmatpush1.bf16.msra.mxu0 0
    %140 = vmatprep.subr.bf16.mxu0 0
    %141 = vmatpush1.bf16.msra.mxu0 0
    %142 = vmatprep.subr.bf16.mxu0 0
    %143 = vmatpush1.bf16.msra.mxu0 0
    %144 = vmatprep.subr.bf16.mxu0 0
    %145 = vmatpush1.bf16.msra.mxu0 0
    %146 = vmatprep.subr.bf16.mxu0 0
    %147 = vmatpush1.bf16.msra.mxu0 0
    %148 = vmatprep.subr.bf16.mxu0 0
    %149 = vmatpush1.bf16.msra.mxu0 0
    %150 = vmatprep.subr.bf16.mxu0 0
    %151 = vmatpush1.bf16.msra.mxu0 0
    %152 = vmatprep.subr.bf16.mxu0 0
    %153 = vmatpush1.bf16.msra.mxu0 0
    %154 = vmatprep.subr.bf16.mxu0 0
    %155 = vmatpush1.bf16.msra.mxu0 0
    %156 = vmatprep.subr.bf16.mxu0 0
    %157 = vmatpush1.bf16.msra.mxu0 0
    %158 = vmatprep.subr.bf16.mxu0 0
    %159 = vmatpush1.bf16.msra.mxu0 0
    %160 = vmatprep.mubr.bf16.mxu0 0
    %161 = vmatmul.mubr.bf16.gmra.mrb[0].mxu0 %v110
    %v162 = vpop.f32.mrb[0].mxu0
    %v163 = vadd.f32 %v75, %v162
    %v164 = vpop.f32.mrb[0].mxu0
    %v165 = vadd.f32 %v79, %v164
    %v166 = vpop.f32.mrb[0].mxu0
    %v167 = vadd.f32 %v75, %v166
    %v168 = vpop.f32.mrb[0].mxu0
    %v169 = vadd.f32 %v79, %v168
    %170 = vdwg.mxu0
    %171 = vmatprep.subr.bf16.mxu0 %v126
    %172 = vmatpush1.bf16.msra.mxu0 %v123
    %173 = vmatprep.subr.bf16.mxu0 0
    %174 = vmatpush1.bf16.msra.mxu0 0
    %175 = vmatprep.subr.bf16.mxu0 0
    %176 = vmatpush1.bf16.msra.mxu0 0
    %177 = vmatprep.subr.bf16.mxu0 0
    %178 = vmatpush1.bf16.msra.mxu0 0
    %179 = vmatprep.subr.bf16.mxu0 0
    %180 = vmatpush1.bf16.msra.mxu0 0
    %181 = vmatprep.subr.bf16.mxu0 0
    %182 = vmatpush1.bf16.msra.mxu0 0
    %183 = vmatprep.subr.bf16.mxu0 0
    %184 = vmatpush1.bf16.msra.mxu0 0
    %185 = vmatprep.subr.bf16.mxu0 0
    %186 = vmatpush1.bf16.msra.mxu0 0
    %187 = vmatprep.subr.bf16.mxu0 0
    %188 = vmatpush1.bf16.msra.mxu0 0
    %189 = vmatprep.subr.bf16.mxu0 0
    %190 = vmatpush1.bf16.msra.mxu0 0
    %191 = vmatprep.subr.bf16.mxu0 0
    %192 = vmatpush1.bf16.msra.mxu0 0
    %193 = vmatprep.subr.bf16.mxu0 0
    %194 = vmatpush1.bf16.msra.mxu0 0
    %195 = vmatprep.subr.bf16.mxu0 0
    %196 = vmatpush1.bf16.msra.mxu0 0
    %197 = vmatprep.subr.bf16.mxu0 0
    %198 = vmatpush1.bf16.msra.mxu0 0
    %199 = vmatprep.subr.bf16.mxu0 0
    %200 = vmatpush1.bf16.msra.mxu0 0
    %201 = vmatprep.subr.bf16.mxu0 0
    %202 = vmatpush1.bf16.msra.mxu0 0
    %203 = vmatprep.mubr.bf16.mxu0 0
    %204 = vmatmul.mubr.bf16.gmra.mrb[0].mxu0 %v110
    %v205 = vpop.f32.mrb[0].mxu0
    %v206 = vadd.f32 %v83, %v205
    %v207 = vpop.f32.mrb[0].mxu0
    %v208 = vadd.f32 %v87, %v207
    %v209 = vpop.f32.mrb[0].mxu0
    %v210 = vadd.f32 %v83, %v209
    %v211 = vpop.f32.mrb[0].mxu0
    %v212 = vadd.f32 %v87, %v211
    %213 = vdwg.mxu0
    %v214 = vmax.f32 %v163, 0.0
    %v215 = vmax.f32 %v165, 0.0
    %v216 = vmax.f32 %v206, 0.0
    %v217 = vmax.f32 %v208, 0.0
    %v218 = vmax.f32 %v167, 0.0
    %v219 = vmax.f32 %v169, 0.0
    %v220 = vmax.f32 %v210, 0.0
    %v221 = vmax.f32 %v212, 0.0
    %v222 = vpack.c.bf16 %v218, %v214
    %v223 = vpack.c.bf16 %v219, %v215
    %v224 = vpack.c.bf16 %v220, %v216
    %v225 = vpack.c.bf16 %v221, %v217
    %v226 = vld [vmem:[#allocation6] sm:$0xff]
    %v227 = vld [vmem:[#allocation6 + $0x8] sm:$0xf]
    %v228 = vld [vmem:[#allocation6 + $0xc] sm:$0xff]
    %v229 = vld [vmem:[#allocation6 + $0x14] sm:$0xf]
    %v230 = vld [vmem:[#allocation6 + $0x18] sm:$0xff]
    %v231 = vld [vmem:[#allocation6 + $0x20] sm:$0xf]
    %v232 = vld [vmem:[#allocation6 + $0x24] sm:$0xff]
    %v233 = vld [vmem:[#allocation6 + $0x2c] sm:$0xf]
    %v234 = vld [vmem:[#allocation6 + $0x30] sm:$0xff]
    %v235 = vld [vmem:[#allocation6 + $0x38] sm:$0xf]
    %v236 = vld [vmem:[#allocation6 + $0x3c] sm:$0xff]
    %v237 = vld [vmem:[#allocation6 + $0x44] sm:$0xf]
    %v238 = vld [vmem:[#allocation6 + $0x48] sm:$0xff]
    %v239 = vld [vmem:[#allocation6 + $0x50] sm:$0xf]
    %v240 = vld [vmem:[#allocation6 + $0x54] sm:$0xff]
    %v241 = vld [vmem:[#allocation6 + $0x5c] sm:$0xf]
    %v242 = vld [vmem:[#allocation6 + $0x60] sm:$0xff]
    %v243 = vld [vmem:[#allocation6 + $0x68] sm:$0xf]
    %v244 = vld [vmem:[#allocation6 + $0x6c] sm:$0xff]
    %v245 = vld [vmem:[#allocation6 + $0x74] sm:$0xf]
    %v246 = vld [vmem:[#allocation6 + $0x78] sm:$0xff]
    %v247 = vld [vmem:[#allocation6 + $0x80] sm:$0xf]
    %v248 = vld [vmem:[#allocation6 + $0x84] sm:$0xff]
    %v249 = vld [vmem:[#allocation6 + $0x8c] sm:$0xf]
    %v250 = vld [vmem:[#allocation6 + $0x90] sm:$0xff]
    %v251 = vld [vmem:[#allocation6 + $0x98] sm:$0xf]
    %v252 = vld [vmem:[#allocation6 + $0x9c] sm:$0xff]
    %v253 = vld [vmem:[#allocation6 + $0xa4] sm:$0xf]
    %v254 = vld [vmem:[#allocation6 + $0xa8] sm:$0xff]
    %v255 = vld [vmem:[#allocation6 + $0xb0] sm:$0xf]
    %v256 = vld [vmem:[#allocation6 + $0xb4] sm:$0xff]
    %v257 = vld [vmem:[#allocation6 + $0xbc] sm:$0xf]
    %v258 = vld [vmem:[#allocation6 + $0xc0] sm:$0xff]
    %v259 = vld [vmem:[#allocation6 + $0xc8] sm:$0xf]
    %v260 = vld [vmem:[#allocation6 + $0xcc] sm:$0xff]
    %v261 = vld [vmem:[#allocation6 + $0xd4] sm:$0xf]
    %v262 = vld [vmem:[#allocation6 + $0xd8] sm:$0xff]
    %v263 = vld [vmem:[#allocation6 + $0xe0] sm:$0xf]
    %v264 = vld [vmem:[#allocation6 + $0xe4] sm:$0xff]
    %v265 = vld [vmem:[#allocation6 + $0xec] sm:$0xf]
    %v266 = vld [vmem:[#allocation6 + $0xf0] sm:$0xff]
    %v267 = vld [vmem:[#allocation6 + $0xf8] sm:$0xf]
    %v268 = vld [vmem:[#allocation6 + $0xfc] sm:$0xff]
    %v269 = vld [vmem:[#allocation6 + $0x104] sm:$0xf]
    %v270 = vld [vmem:[#allocation6 + $0x108] sm:$0xff]
    %v271 = vld [vmem:[#allocation6 + $0x110] sm:$0xf]
    %v272 = vld [vmem:[#allocation6 + $0x114] sm:$0xff]
    %v273 = vld [vmem:[#allocation6 + $0x11c] sm:$0xf]
    %v274 = vld [vmem:[#allocation6 + $0x120] sm:$0xff]
    %v275 = vld [vmem:[#allocation6 + $0x128] sm:$0xf]
    %v276 = vld [vmem:[#allocation6 + $0x12c] sm:$0xff]
    %v277 = vld [vmem:[#allocation6 + $0x134] sm:$0xf]
    %v278 = vld [vmem:[#allocation6 + $0x138] sm:$0xff]
    %v279 = vld [vmem:[#allocation6 + $0x140] sm:$0xf]
    %v280 = vld [vmem:[#allocation6 + $0x144] sm:$0xff]
    %v281 = vld [vmem:[#allocation6 + $0x14c] sm:$0xf]
    %v282 = vld [vmem:[#allocation6 + $0x150] sm:$0xff]
    %v283 = vld [vmem:[#allocation6 + $0x158] sm:$0xf]
    %v284 = vld [vmem:[#allocation6 + $0x15c] sm:$0xff]
    %v285 = vld [vmem:[#allocation6 + $0x164] sm:$0xf]
    %v286 = vld [vmem:[#allocation6 + $0x168] sm:$0xff]
    %v287 = vld [vmem:[#allocation6 + $0x170] sm:$0xf]
    %v288 = vld [vmem:[#allocation6 + $0x174] sm:$0xff]
    %v289 = vld [vmem:[#allocation6 + $0x17c] sm:$0xf]
    %v290 = vld [vmem:[#allocation6 + $0x180] sm:$0xff]
    %v291 = vld [vmem:[#allocation6 + $0x188] sm:$0xf]
    %v292 = vld [vmem:[#allocation6 + $0x18c] sm:$0xff]
    %v293 = vld [vmem:[#allocation6 + $0x194] sm:$0xf]
    %v294 = vld [vmem:[#allocation6 + $0x198] sm:$0xff]
    %v295 = vld [vmem:[#allocation6 + $0x1a0] sm:$0xf]
    %v296 = vld [vmem:[#allocation6 + $0x1a4] sm:$0xff]
    %v297 = vld [vmem:[#allocation6 + $0x1ac] sm:$0xf]
    %v298 = vld [vmem:[#allocation6 + $0x1b0] sm:$0xff]
    %v299 = vld [vmem:[#allocation6 + $0x1b8] sm:$0xf]
    %v300 = vld [vmem:[#allocation6 + $0x1bc] sm:$0xff]
    %v301 = vld [vmem:[#allocation6 + $0x1c4] sm:$0xf]
    %v302 = vld [vmem:[#allocation6 + $0x1c8] sm:$0xff]
    %v303 = vld [vmem:[#allocation6 + $0x1d0] sm:$0xf]
    %v304 = vld [vmem:[#allocation6 + $0x1d4] sm:$0xff]
    %v305 = vld [vmem:[#allocation6 + $0x1dc] sm:$0xf]
    %v306 = vld [vmem:[#allocation6 + $0x1e0] sm:$0xff]
    %v307 = vld [vmem:[#allocation6 + $0x1e8] sm:$0xf]
    %v308 = vld [vmem:[#allocation6 + $0x1ec] sm:$0xff]
    %v309 = vld [vmem:[#allocation6 + $0x1f4] sm:$0xf]
    %v310 = vld [vmem:[#allocation6 + $0x1f8] sm:$0xff]
    %v311 = vld [vmem:[#allocation6 + $0x200] sm:$0xf]
    %v312 = vld [vmem:[#allocation6 + $0x204] sm:$0xff]
    %v313 = vld [vmem:[#allocation6 + $0x20c] sm:$0xf]
    %v314 = vld [vmem:[#allocation6 + $0x210] sm:$0xff]
    %v315 = vld [vmem:[#allocation6 + $0x218] sm:$0xf]
    %v316 = vld [vmem:[#allocation6 + $0x21c] sm:$0xff]
    %v317 = vld [vmem:[#allocation6 + $0x224] sm:$0xf]
    %v318 = vld [vmem:[#allocation6 + $0x228] sm:$0xff]
    %v319 = vld [vmem:[#allocation6 + $0x230] sm:$0xf]
    %v320 = vld [vmem:[#allocation6 + $0x234] sm:$0xff]
    %v321 = vld [vmem:[#allocation6 + $0x23c] sm:$0xf]
    %v322 = vld [vmem:[#allocation6 + $0x240] sm:$0xff]
    %v323 = vld [vmem:[#allocation6 + $0x248] sm:$0xf]
    %v324 = vld [vmem:[#allocation6 + $0x24c] sm:$0xff]
    %v325 = vld [vmem:[#allocation6 + $0x254] sm:$0xf]
    %v326 = vld [vmem:[%s1] sm:$0xff]
    %v327 = vld [vmem:[%s1 + $0x8] sm:$0xff]
    %v328 = vld [vmem:[%s5] sm:$0x7]
    %330 = vset.pattern.permute.xlu0 0
    %331 = vperm.xlu0 %330, %v326
    %v332 = vpop.permute.xlu0 %331
    %335 = vset.pattern.permute.xlu0 0
    %336 = vperm.xlu0 %335, %v327
    %v337 = vpop.permute.xlu0 %336
    %v340 = vlaneseq
    %v341 = vshrl.u32 %v340, 7
    %v342 = vsub.s32 0, %v341
    %v343 = vrot.slane %v328, %v342
    %v344 = vlaneseq
    %v345 = vshrl.u32 %v344, 7
    %v346 = vsub.s32 1, %v345
    %v347 = vrot.slane %v328, %v346
    %v348 = vlaneseq
    %v349 = vshrl.u32 %v348, 7
    %v350 = vsub.s32 2, %v349
    %v351 = vrot.slane %v328, %v350
    %v355 = vmul.f32 %v332, %v343
    %v356 = vmul.f32 %v332, %v347
    %v357 = vmul.f32 %v332, %v351
    %v358 = vmul.f32 %v337, %v343
    %v359 = vmul.f32 %v337, %v347
    %v360 = vmul.f32 %v337, %v351
    %v461 = vunpack.c.l.b16 %v226
    %v462 = vunpack.c.h.b16 %v226
    %v463 = vunpack.c.l.b16 %v227
    %v464 = vunpack.c.l.b16 %v228
    %v465 = vunpack.c.h.b16 %v228
    %v466 = vunpack.c.l.b16 %v229
    %v467 = vunpack.c.l.b16 %v230
    %v468 = vunpack.c.h.b16 %v230
    %v469 = vunpack.c.l.b16 %v231
    %v470 = vunpack.c.l.b16 %v232
    %v471 = vunpack.c.h.b16 %v232
    %v472 = vunpack.c.l.b16 %v233
    %v473 = vunpack.c.l.b16 %v234
    %v474 = vunpack.c.h.b16 %v234
    %v475 = vunpack.c.l.b16 %v235
    %v476 = vunpack.c.l.b16 %v236
    %v477 = vunpack.c.h.b16 %v236
    %v478 = vunpack.c.l.b16 %v237
    %v479 = vunpack.c.l.b16 %v238
    %v480 = vunpack.c.h.b16 %v238
    %v481 = vunpack.c.l.b16 %v239
    %v482 = vunpack.c.l.b16 %v240
    %v483 = vunpack.c.h.b16 %v240
    %v484 = vunpack.c.l.b16 %v241
    %v485 = vunpack.c.l.b16 %v242
    %v486 = vunpack.c.h.b16 %v242
    %v487 = vunpack.c.l.b16 %v243
    %v488 = vunpack.c.l.b16 %v244
    %v489 = vunpack.c.h.b16 %v244
    %v490 = vunpack.c.l.b16 %v245
    %v491 = vunpack.c.l.b16 %v246
    %v492 = vunpack.c.h.b16 %v246
    %v493 = vunpack.c.l.b16 %v247
    %v494 = vunpack.c.l.b16 %v248
    %v495 = vunpack.c.h.b16 %v248
    %v496 = vunpack.c.l.b16 %v249
    %v497 = vunpack.c.l.b16 %v250
    %v498 = vunpack.c.h.b16 %v250
    %v499 = vunpack.c.l.b16 %v251
    %v500 = vunpack.c.l.b16 %v252
    %v501 = vunpack.c.h.b16 %v252
    %v502 = vunpack.c.l.b16 %v253
    %v503 = vunpack.c.l.b16 %v254
    %v504 = vunpack.c.h.b16 %v254
    %v505 = vunpack.c.l.b16 %v255
    %v506 = vunpack.c.l.b16 %v256
    %v507 = vunpack.c.h.b16 %v256
    %v508 = vunpack.c.l.b16 %v257
    %v509 = vunpack.c.l.b16 %v258
    %v510 = vunpack.c.h.b16 %v258
    %v511 = vunpack.c.l.b16 %v259
    %v512 = vunpack.c.l.b16 %v260
    %v513 = vunpack.c.h.b16 %v260
    %v514 = vunpack.c.l.b16 %v261
    %v515 = vunpack.c.l.b16 %v262
    %v516 = vunpack.c.h.b16 %v262
    %v517 = vunpack.c.l.b16 %v263
    %v518 = vunpack.c.l.b16 %v264
    %v519 = vunpack.c.h.b16 %v264
    %v520 = vunpack.c.l.b16 %v265
    %v521 = vunpack.c.l.b16 %v266
    %v522 = vunpack.c.h.b16 %v266
    %v523 = vunpack.c.l.b16 %v267
    %v524 = vunpack.c.l.b16 %v268
    %v525 = vunpack.c.h.b16 %v268
    %v526 = vunpack.c.l.b16 %v269
    %v527 = vunpack.c.l.b16 %v270
    %v528 = vunpack.c.h.b16 %v270
    %v529 = vunpack.c.l.b16 %v271
    %v530 = vunpack.c.l.b16 %v272
    %v531 = vunpack.c.h.b16 %v272
    %v532 = vunpack.c.l.b16 %v273
    %v533 = vunpack.c.l.b16 %v274
    %v534 = vunpack.c.h.b16 %v274
    %v535 = vunpack.c.l.b16 %v275
    %v536 = vunpack.c.l.b16 %v276
    %v537 = vunpack.c.h.b16 %v276
    %v538 = vunpack.c.l.b16 %v277
    %v539 = vunpack.c.l.b16 %v278
    %v540 = vunpack.c.h.b16 %v278
    %v541 = vunpack.c.l.b16 %v279
    %v542 = vunpack.c.l.b16 %v280
    %v543 = vunpack.c.h.b16 %v280
    %v544 = vunpack.c.l.b16 %v281
    %v545 = vunpack.c.l.b16 %v282
    %v546 = vunpack.c.h.b16 %v282
    %v547 = vunpack.c.l.b16 %v283
    %v548 = vunpack.c.l.b16 %v284
    %v549 = vunpack.c.h.b16 %v284
    %v550 = vunpack.c.l.b16 %v285
    %v551 = vunpack.c.l.b16 %v286
    %v552 = vunpack.c.h.b16 %v286
    %v553 = vunpack.c.l.b16 %v287
    %v554 = vunpack.c.l.b16 %v288
    %v555 = vunpack.c.h.b16 %v288
    %v556 = vunpack.c.l.b16 %v289
    %v557 = vunpack.c.l.b16 %v290
    %v558 = vunpack.c.h.b16 %v290
    %v559 = vunpack.c.l.b16 %v291
    %v560 = vunpack.c.l.b16 %v292
    %v561 = vunpack.c.h.b16 %v292
    %v562 = vunpack.c.l.b16 %v293
    %v563 = vunpack.c.l.b16 %v294
    %v564 = vunpack.c.h.b16 %v294
    %v565 = vunpack.c.l.b16 %v295
    %v566 = vunpack.c.l.b16 %v296
    %v567 = vunpack.c.h.b16 %v296
    %v568 = vunpack.c.l.b16 %v297
    %v569 = vunpack.c.l.b16 %v298
    %v570 = vunpack.c.h.b16 %v298
    %v571 = vunpack.c.l.b16 %v299
    %v572 = vunpack.c.l.b16 %v300
    %v573 = vunpack.c.h.b16 %v300
    %v574 = vunpack.c.l.b16 %v301
    %v575 = vunpack.c.l.b16 %v302
    %v576 = vunpack.c.h.b16 %v302
    %v577 = vunpack.c.l.b16 %v303
    %v578 = vunpack.c.l.b16 %v304
    %v579 = vunpack.c.h.b16 %v304
    %v580 = vunpack.c.l.b16 %v305
    %v581 = vunpack.c.l.b16 %v306
    %v582 = vunpack.c.h.b16 %v306
    %v583 = vunpack.c.l.b16 %v307
    %v584 = vunpack.c.l.b16 %v308
    %v585 = vunpack.c.h.b16 %v308
    %v586 = vunpack.c.l.b16 %v309
    %v587 = vunpack.c.l.b16 %v310
    %v588 = vunpack.c.h.b16 %v310
    %v589 = vunpack.c.l.b16 %v311
    %v590 = vunpack.c.l.b16 %v312
    %v591 = vunpack.c.h.b16 %v312
    %v592 = vunpack.c.l.b16 %v313
    %v593 = vunpack.c.l.b16 %v314
    %v594 = vunpack.c.h.b16 %v314
    %v595 = vunpack.c.l.b16 %v315
    %v596 = vunpack.c.l.b16 %v316
    %v597 = vunpack.c.h.b16 %v316
    %v598 = vunpack.c.l.b16 %v317
    %v599 = vunpack.c.l.b16 %v318
    %v600 = vunpack.c.h.b16 %v318
    %v601 = vunpack.c.l.b16 %v319
    %v602 = vunpack.c.l.b16 %v320
    %v603 = vunpack.c.h.b16 %v320
    %v604 = vunpack.c.l.b16 %v321
    %v605 = vunpack.c.l.b16 %v322
    %v606 = vunpack.c.h.b16 %v322
    %v607 = vunpack.c.l.b16 %v323
    %v608 = vunpack.c.l.b16 %v324
    %v609 = vunpack.c.h.b16 %v324
    %v610 = vunpack.c.l.b16 %v325
    %v611 = vpack.c.b16 %v464, %v461
    %v612 = vpack.c.b16 %v465, %v462
    %v613 = vpack.c.b16 %v466, %v463
    %v614 = vpack.c.b16 %v470, %v467
    %v615 = vpack.c.b16 %v471, %v468
    %v616 = vpack.c.b16 %v472, %v469
    %v617 = vpack.c.b16 %v476, %v473
    %v618 = vpack.c.b16 %v477, %v474
    %v619 = vpack.c.b16 %v478, %v475
    %v620 = vpack.c.b16 %v482, %v479
    %v621 = vpack.c.b16 %v483, %v480
    %v622 = vpack.c.b16 %v484, %v481
    %v623 = vpack.c.b16 %v488, %v485
    %v624 = vpack.c.b16 %v489, %v486
    %v625 = vpack.c.b16 %v490, %v487
    %v626 = vpack.c.b16 %v494, %v491
    %v627 = vpack.c.b16 %v495, %v492
    %v628 = vpack.c.b16 %v496, %v493
    %v629 = vpack.c.b16 %v500, %v497
    %v630 = vpack.c.b16 %v501, %v498
    %v631 = vpack.c.b16 %v502, %v499
    %v632 = vpack.c.b16 %v506, %v503
    %v633 = vpack.c.b16 %v507, %v504
    %v634 = vpack.c.b16 %v508, %v505
    %v635 = vpack.c.b16 %v512, %v509
    %v636 = vpack.c.b16 %v513, %v510
    %v637 = vpack.c.b16 %v514, %v511
    %v638 = vpack.c.b16 %v518, %v515
    %v639 = vpack.c.b16 %v519, %v516
    %v640 = vpack.c.b16 %v520, %v517
    %v641 = vpack.c.b16 %v524, %v521
    %v642 = vpack.c.b16 %v525, %v522
    %v643 = vpack.c.b16 %v526, %v523
    %v644 = vpack.c.b16 %v530, %v527
    %v645 = vpack.c.b16 %v531, %v528
    %v646 = vpack.c.b16 %v532, %v529
    %v647 = vpack.c.b16 %v536, %v533
    %v648 = vpack.c.b16 %v537, %v534
    %v649 = vpack.c.b16 %v538, %v535
    %v650 = vpack.c.b16 %v542, %v539
    %v651 = vpack.c.b16 %v543, %v540
    %v652 = vpack.c.b16 %v544, %v541
    %v653 = vpack.c.b16 %v548, %v545
    %v654 = vpack.c.b16 %v549, %v546
    %v655 = vpack.c.b16 %v550, %v547
    %v656 = vpack.c.b16 %v554, %v551
    %v657 = vpack.c.b16 %v555, %v552
    %v658 = vpack.c.b16 %v556, %v553
    %v659 = vpack.c.b16 %v560, %v557
    %v660 = vpack.c.b16 %v561, %v558
    %v661 = vpack.c.b16 %v562, %v559
    %v662 = vpack.c.b16 %v566, %v563
    %v663 = vpack.c.b16 %v567, %v564
    %v664 = vpack.c.b16 %v568, %v565
    %v665 = vpack.c.b16 %v572, %v569
    %v666 = vpack.c.b16 %v573, %v570
    %v667 = vpack.c.b16 %v574, %v571
    %v668 = vpack.c.b16 %v578, %v575
    %v669 = vpack.c.b16 %v579, %v576
    %v670 = vpack.c.b16 %v580, %v577
    %v671 = vpack.c.b16 %v584, %v581
    %v672 = vpack.c.b16 %v585, %v582
    %v673 = vpack.c.b16 %v586, %v583
    %v674 = vpack.c.b16 %v590, %v587
    %v675 = vpack.c.b16 %v591, %v588
    %v676 = vpack.c.b16 %v592, %v589
    %v677 = vpack.c.b16 %v596, %v593
    %v678 = vpack.c.b16 %v597, %v594
    %v679 = vpack.c.b16 %v598, %v595
    %v680 = vpack.c.b16 %v602, %v599
    %v681 = vpack.c.b16 %v603, %v600
    %v682 = vpack.c.b16 %v604, %v601
    %v683 = vpack.c.b16 %v608, %v605
    %v684 = vpack.c.b16 %v609, %v606
    %v685 = vpack.c.b16 %v610, %v607
    %vm761 = vcmask 130048
    %v763 = vsel %vm761, %v225, 0
    %765 = vmatprep.subr.bf16.mxu0 %v612
    %766 = vmatpush1.bf16.msra.mxu0 %v611
    %767 = vmatprep.subr.bf16.mxu0 %v615
    %768 = vmatpush1.bf16.msra.mxu0 %v614
    %769 = vmatprep.subr.bf16.mxu0 %v618
    %770 = vmatpush1.bf16.msra.mxu0 %v617
    %771 = vmatprep.subr.bf16.mxu0 %v621
    %772 = vmatpush1.bf16.msra.mxu0 %v620
    %773 = vmatprep.subr.bf16.mxu0 %v624
    %774 = vmatpush1.bf16.msra.mxu0 %v623
    %775 = vmatprep.subr.bf16.mxu0 %v627
    %776 = vmatpush1.bf16.msra.mxu0 %v626
    %777 = vmatprep.subr.bf16.mxu0 %v630
    %778 = vmatpush1.bf16.msra.mxu0 %v629
    %779 = vmatprep.subr.bf16.mxu0 %v633
    %780 = vmatpush1.bf16.msra.mxu0 %v632
    %781 = vmatprep.subr.bf16.mxu0 %v636
    %782 = vmatpush1.bf16.msra.mxu0 %v635
    %783 = vmatprep.subr.bf16.mxu0 %v639
    %784 = vmatpush1.bf16.msra.mxu0 %v638
    %785 = vmatprep.subr.bf16.mxu0 %v642
    %786 = vmatpush1.bf16.msra.mxu0 %v641
    %787 = vmatprep.subr.bf16.mxu0 %v645
    %788 = vmatpush1.bf16.msra.mxu0 %v644
    %789 = vmatprep.subr.bf16.mxu0 %v648
    %790 = vmatpush1.bf16.msra.mxu0 %v647
    %791 = vmatprep.subr.bf16.mxu0 %v651
    %792 = vmatpush1.bf16.msra.mxu0 %v650
    %793 = vmatprep.subr.bf16.mxu0 %v654
    %794 = vmatpush1.bf16.msra.mxu0 %v653
    %795 = vmatprep.subr.bf16.mxu0 %v657
    %796 = vmatpush1.bf16.msra.mxu0 %v656
    %797 = vmatprep.mubr.bf16.mxu0 %v223
    %798 = vmatmul.mubr.bf16.gmra.mrb[0].mxu0 %v222
    %v799 = vpop.f32.mrb[0].mxu0
    %v800 = vadd.f32 %v355, %v799
    %v801 = vpop.f32.mrb[0].mxu0
    %v802 = vadd.f32 %v356, %v801
    %v803 = vpop.f32.mrb[0].mxu0
    %v804 = vadd.f32 %v358, %v803
    %v805 = vpop.f32.mrb[0].mxu0
    %v806 = vadd.f32 %v359, %v805
    %807 = vdwg.mxu0
    %808 = vmatprep.subr.bf16.mxu0 %v660
    %809 = vmatpush1.bf16.msra.mxu0 %v659
    %810 = vmatprep.subr.bf16.mxu0 %v663
    %811 = vmatpush1.bf16.msra.mxu0 %v662
    %812 = vmatprep.subr.bf16.mxu0 %v666
    %813 = vmatpush1.bf16.msra.mxu0 %v665
    %814 = vmatprep.subr.bf16.mxu0 %v669
    %815 = vmatpush1.bf16.msra.mxu0 %v668
    %816 = vmatprep.subr.bf16.mxu0 %v672
    %817 = vmatpush1.bf16.msra.mxu0 %v671
    %818 = vmatprep.subr.bf16.mxu0 %v675
    %819 = vmatpush1.bf16.msra.mxu0 %v674
    %820 = vmatprep.subr.bf16.mxu0 %v678
    %821 = vmatpush1.bf16.msra.mxu0 %v677
    %822 = vmatprep.subr.bf16.mxu0 %v681
    %823 = vmatpush1.bf16.msra.mxu0 %v680
    %824 = vmatprep.subr.bf16.mxu0 %v684
    %825 = vmatpush1.bf16.msra.mxu0 %v683
    %826 = vmatprep.subr.bf16.mxu0 0
    %827 = vmatpush1.bf16.msra.mxu0 0
    %828 = vmatprep.subr.bf16.mxu0 0
    %829 = vmatpush1.bf16.msra.mxu0 0
    %830 = vmatprep.subr.bf16.mxu0 0
    %831 = vmatpush1.bf16.msra.mxu0 0
    %832 = vmatprep.subr.bf16.mxu0 0
    %833 = vmatpush1.bf16.msra.mxu0 0
    %834 = vmatprep.subr.bf16.mxu0 0
    %835 = vmatpush1.bf16.msra.mxu0 0
    %836 = vmatprep.subr.bf16.mxu0 0
    %837 = vmatpush1.bf16.msra.mxu0 0
    %838 = vmatprep.subr.bf16.mxu0 0
    %839 = vmatpush1.bf16.msra.mxu0 0
    %840 = vmatprep.mubr.bf16.mxu0 %v763
    %841 = vmatmul.mubr.bf16.gmra.mrb[0].mxu0 %v224
    %v842 = vpop.f32.mrb[0].mxu0
    %v843 = vadd.f32 %v800, %v842
    %v844 = vpop.f32.mrb[0].mxu0
    %v845 = vadd.f32 %v802, %v844
    %v846 = vpop.f32.mrb[0].mxu0
    %v847 = vadd.f32 %v804, %v846
    %v848 = vpop.f32.mrb[0].mxu0
    %v849 = vadd.f32 %v806, %v848
    %850 = vdwg.mxu0
    %851 = vmatprep.subr.bf16.mxu0 0
    %852 = vmatpush1.bf16.msra.mxu0 %v613
    %853 = vmatprep.subr.bf16.mxu0 0
    %854 = vmatpush1.bf16.msra.mxu0 %v616
    %855 = vmatprep.subr.bf16.mxu0 0
    %856 = vmatpush1.bf16.msra.mxu0 %v619
    %857 = vmatprep.subr.bf16.mxu0 0
    %858 = vmatpush1.bf16.msra.mxu0 %v622
    %859 = vmatprep.subr.bf16.mxu0 0
    %860 = vmatpush1.bf16.msra.mxu0 %v625
    %861 = vmatprep.subr.bf16.mxu0 0
    %862 = vmatpush1.bf16.msra.mxu0 %v628
    %863 = vmatprep.subr.bf16.mxu0 0
    %864 = vmatpush1.bf16.msra.mxu0 %v631
    %865 = vmatprep.subr.bf16.mxu0 0
    %866 = vmatpush1.bf16.msra.mxu0 %v634
    %867 = vmatprep.subr.bf16.mxu0 0
    %868 = vmatpush1.bf16.msra.mxu0 %v637
    %869 = vmatprep.subr.bf16.mxu0 0
    %870 = vmatpush1.bf16.msra.mxu0 %v640
    %871 = vmatprep.subr.bf16.mxu0 0
    %872 = vmatpush1.bf16.msra.mxu0 %v643
    %873 = vmatprep.subr.bf16.mxu0 0
    %874 = vmatpush1.bf16.msra.mxu0 %v646
    %875 = vmatprep.subr.bf16.mxu0 0
    %876 = vmatpush1.bf16.msra.mxu0 %v649
    %877 = vmatprep.subr.bf16.mxu0 0
    %878 = vmatpush1.bf16.msra.mxu0 %v652
    %879 = vmatprep.subr.bf16.mxu0 0
    %880 = vmatpush1.bf16.msra.mxu0 %v655
    %881 = vmatprep.subr.bf16.mxu0 0
    %882 = vmatpush1.bf16.msra.mxu0 %v658
    %883 = vmatprep.mubr.bf16.mxu0 %v223
    %884 = vmatmul.mubr.bf16.gmra.mrb[0].mxu0 %v222
    %v885 = vpop.f32.mrb[0].mxu0
    %v886 = vadd.f32 %v357, %v885
    %v887 = vpop.f32.mrb[0].mxu0
    %v888 = vpop.f32.mrb[0].mxu0
    %v889 = vadd.f32 %v360, %v888
    %v890 = vpop.f32.mrb[0].mxu0
    %891 = vdwg.mxu0
    %892 = vmatprep.subr.bf16.mxu0 0
    %893 = vmatpush1.bf16.msra.mxu0 %v661
    %894 = vmatprep.subr.bf16.mxu0 0
    %895 = vmatpush1.bf16.msra.mxu0 %v664
    %896 = vmatprep.subr.bf16.mxu0 0
    %897 = vmatpush1.bf16.msra.mxu0 %v667
    %898 = vmatprep.subr.bf16.mxu0 0
    %899 = vmatpush1.bf16.msra.mxu0 %v670
    %900 = vmatprep.subr.bf16.mxu0 0
    %901 = vmatpush1.bf16.msra.mxu0 %v673
    %902 = vmatprep.subr.bf16.mxu0 0
    %903 = vmatpush1.bf16.msra.mxu0 %v676
    %904 = vmatprep.subr.bf16.mxu0 0
    %905 = vmatpush1.bf16.msra.mxu0 %v679
    %906 = vmatprep.subr.bf16.mxu0 0
    %907 = vmatpush1.bf16.msra.mxu0 %v682
    %908 = vmatprep.subr.bf16.mxu0 0
    %909 = vmatpush1.bf16.msra.mxu0 %v685
    %910 = vmatprep.subr.bf16.mxu0 0
    %911 = vmatpush1.bf16.msra.mxu0 0
    %912 = vmatprep.subr.bf16.mxu0 0
    %913 = vmatpush1.bf16.msra.mxu0 0
    %914 = vmatprep.subr.bf16.mxu0 0
    %915 = vmatpush1.bf16.msra.mxu0 0
    %916 = vmatprep.subr.bf16.mxu0 0
    %917 = vmatpush1.bf16.msra.mxu0 0
    %918 = vmatprep.subr.bf16.mxu0 0
    %919 = vmatpush1.bf16.msra.mxu0 0
    %920 = vmatprep.subr.bf16.mxu0 0
    %921 = vmatpush1.bf16.msra.mxu0 0
    %922 = vmatprep.subr.bf16.mxu0 0
    %923 = vmatpush1.bf16.msra.mxu0 0
    %924 = vmatprep.mubr.bf16.mxu0 %v763
    %925 = vmatmul.mubr.bf16.gmra.mrb[0].mxu0 %v224
    %v926 = vpop.f32.mrb[0].mxu0
    %v927 = vadd.f32 %v886, %v926
    %v928 = vpop.f32.mrb[0].mxu0
    %v929 = vpop.f32.mrb[0].mxu0
    %v930 = vadd.f32 %v889, %v929
    %v931 = vpop.f32.mrb[0].mxu0
    %932 = vdwg.mxu0
    %v933 = vld [vmem:[%s6] sm:$0x7]
    %v935 = vlaneseq
    %v936 = vshrl.u32 %v935, 7
    %v937 = vsub.s32 0, %v936
    %v938 = vrot.slane %v933, %v937
    %v939 = vlaneseq
    %v940 = vshrl.u32 %v939, 7
    %v941 = vsub.s32 1, %v940
    %v942 = vrot.slane %v933, %v941
    %v943 = vlaneseq
    %v944 = vshrl.u32 %v943, 7
    %v945 = vsub.s32 2, %v944
    %v946 = vrot.slane %v933, %v945
    %v950 = vadd.f32 %v843, %v938
    %v951 = vadd.f32 %v845, %v942
    %v952 = vadd.f32 %v927, %v946
    %v953 = vadd.f32 %v847, %v938
    %v954 = vadd.f32 %v849, %v942
    %v955 = vadd.f32 %v930, %v946
    %v956 = vmax.f32 %v950, 0.0
    %v957 = vmax.f32 %v951, 0.0
    %v958 = vmax.f32 %v952, 0.0
    %v959 = vmax.f32 %v953, 0.0
    %v960 = vmax.f32 %v954, 0.0
    %v961 = vmax.f32 %v955, 0.0
    %v962 = vld [vmem:[%s7] sm:$0x7]
    %s963 = sld [smem:[#allocation2]]
    %v964 = vstv %s963
    %v966 = vlaneseq
    %v967 = vshrl.u32 %v966, 7
    %v968 = vsub.s32 0, %v967
    %v969 = vrot.slane %v962, %v968
    %v970 = vlaneseq
    %v971 = vshrl.u32 %v970, 7
    %v972 = vsub.s32 1, %v971
    %v973 = vrot.slane %v962, %v972
    %v974 = vlaneseq
    %v975 = vshrl.u32 %v974, 7
    %v976 = vsub.s32 2, %v975
    %v977 = vrot.slane %v962, %v976
    %vm980 = vcmask 359424
    %v981 = vsel %vm980, %v977, 0
    %v984 = vsel %vm980, %v958, 0
    %v987 = vsel %vm980, %v961, 0
    %989 = vmatprep.subr.mxu0 %v957
    %990 = vmatpush1.xpose.msra.mxu0 %v956
    %991 = vmatprep.subr.mxu0 %v960
    %992 = vmatpush1.xpose.msra.mxu0 %v959
    %993 = vmatprep.subr.mxu0 0.0
    %994 = vmatpush1.xpose.msra.mxu0 0.0
    %995 = vmatprep.subr.mxu0 0.0
    %996 = vmatpush1.xpose.msra.mxu0 0.0
    %997 = vmatprep.subr.mxu0 0.0
    %998 = vmatpush1.xpose.msra.mxu0 0.0
    %999 = vmatprep.subr.mxu0 0.0
    %1000 = vmatpush1.xpose.msra.mxu0 0.0
    %1001 = vmatprep.subr.mxu0 0.0
    %1002 = vmatpush1.xpose.msra.mxu0 0.0
    %1003 = vmatprep.subr.mxu0 0.0
    %1004 = vmatpush1.xpose.msra.mxu0 0.0
    %1005 = vmatprep.subr.mxu0 0.0
    %1006 = vmatpush1.xpose.msra.mxu0 0.0
    %1007 = vmatprep.subr.mxu0 0.0
    %1008 = vmatpush1.xpose.msra.mxu0 0.0
    %1009 = vmatprep.subr.mxu0 0.0
    %1010 = vmatpush1.xpose.msra.mxu0 0.0
    %1011 = vmatprep.subr.mxu0 0.0
    %1012 = vmatpush1.xpose.msra.mxu0 0.0
    %1013 = vmatprep.subr.mxu0 0.0
    %1014 = vmatpush1.xpose.msra.mxu0 0.0
    %1015 = vmatprep.subr.mxu0 0.0
    %1016 = vmatpush1.xpose.msra.mxu0 0.0
    %1017 = vmatprep.subr.mxu0 0.0
    %1018 = vmatpush1.xpose.msra.mxu0 0.0
    %1019 = vmatprep.subr.mxu0 0.0
    %1020 = vmatpush1.xpose.msra.mxu0 0.0
    %1021 = vmatprep.subr.mxu0 0.0
    %1022 = vmatpush1.xpose.msra.mxu0 0.0
    %1023 = vmatprep.subr.mxu0 0.0
    %1024 = vmatpush1.xpose.msra.mxu0 0.0
    %1025 = vmatprep.subr.mxu0 0.0
    %1026 = vmatpush1.xpose.msra.mxu0 0.0
    %1027 = vmatprep.subr.mxu0 0.0
    %1028 = vmatpush1.xpose.msra.mxu0 0.0
    %1029 = vmatprep.subr.mxu0 0.0
    %1030 = vmatpush1.xpose.msra.mxu0 0.0
    %1031 = vmatprep.subr.mxu0 0.0
    %1032 = vmatpush1.xpose.msra.mxu0 0.0
    %1033 = vmatprep.subr.mxu0 0.0
    %1034 = vmatpush1.xpose.msra.mxu0 0.0
    %1035 = vmatprep.subr.mxu0 0.0
    %1036 = vmatpush1.xpose.msra.mxu0 0.0
    %1037 = vmatprep.subr.mxu0 0.0
    %1038 = vmatpush1.xpose.msra.mxu0 0.0
    %1039 = vmatprep.subr.mxu0 0.0
    %1040 = vmatpush1.xpose.msra.mxu0 0.0
    %1041 = vmatprep.subr.mxu0 0.0
    %1042 = vmatpush1.xpose.msra.mxu0 0.0
    %1043 = vmatprep.subr.mxu0 0.0
    %1044 = vmatpush1.xpose.msra.mxu0 0.0
    %1045 = vmatprep.subr.mxu0 0.0
    %1046 = vmatpush1.xpose.msra.mxu0 0.0
    %1047 = vmatprep.subr.mxu0 0.0
    %1048 = vmatpush1.xpose.msra.mxu0 0.0
    %1049 = vmatprep.subr.mxu0 0.0
    %1050 = vmatpush1.xpose.msra.mxu0 0.0
    %1051 = vmatprep.subr.mxu0 0.0
    %1052 = vmatpush1.xpose.msra.mxu0 0.0
    %1053 = vmatprep.mubr.f32.mxu0 %v973
    %1054 = vmatmul.mubr.f32.gmra.mrb[0].mxu0 %v969
    %v1055 = vpop.f32.mrb[0].mxu0
    %v1056 = vadd.f32 %v964, %v1055
    %v1057 = vpop.f32.mrb[0].mxu0
    %1058 = vdwg.mxu0
    %1059 = vmatprep.subr.mxu0 0.0
    %1060 = vmatpush1.xpose.msra.mxu0 %v984
    %1061 = vmatprep.subr.mxu0 0.0
    %1062 = vmatpush1.xpose.msra.mxu0 %v987
    %1063 = vmatprep.subr.mxu0 0.0
    %1064 = vmatpush1.xpose.msra.mxu0 0.0
    %1065 = vmatprep.subr.mxu0 0.0
    %1066 = vmatpush1.xpose.msra.mxu0 0.0
    %1067 = vmatprep.subr.mxu0 0.0
    %1068 = vmatpush1.xpose.msra.mxu0 0.0
    %1069 = vmatprep.subr.mxu0 0.0
    %1070 = vmatpush1.xpose.msra.mxu0 0.0
    %1071 = vmatprep.subr.mxu0 0.0
    %1072 = vmatpush1.xpose.msra.mxu0 0.0
    %1073 = vmatprep.subr.mxu0 0.0
    %1074 = vmatpush1.xpose.msra.mxu0 0.0
    %1075 = vmatprep.subr.mxu0 0.0
    %1076 = vmatpush1.xpose.msra.mxu0 0.0
    %1077 = vmatprep.subr.mxu0 0.0
    %1078 = vmatpush1.xpose.msra.mxu0 0.0
    %1079 = vmatprep.subr.mxu0 0.0
    %1080 = vmatpush1.xpose.msra.mxu0 0.0
    %1081 = vmatprep.subr.mxu0 0.0
    %1082 = vmatpush1.xpose.msra.mxu0 0.0
    %1083 = vmatprep.subr.mxu0 0.0
    %1084 = vmatpush1.xpose.msra.mxu0 0.0
    %1085 = vmatprep.subr.mxu0 0.0
    %1086 = vmatpush1.xpose.msra.mxu0 0.0
    %1087 = vmatprep.subr.mxu0 0.0
    %1088 = vmatpush1.xpose.msra.mxu0 0.0
    %1089 = vmatprep.subr.mxu0 0.0
    %1090 = vmatpush1.xpose.msra.mxu0 0.0
    %1091 = vmatprep.subr.mxu0 0.0
    %1092 = vmatpush1.xpose.msra.mxu0 0.0
    %1093 = vmatprep.subr.mxu0 0.0
    %1094 = vmatpush1.xpose.msra.mxu0 0.0
    %1095 = vmatprep.subr.mxu0 0.0
    %1096 = vmatpush1.xpose.msra.mxu0 0.0
    %1097 = vmatprep.subr.mxu0 0.0
    %1098 = vmatpush1.xpose.msra.mxu0 0.0
    %1099 = vmatprep.subr.mxu0 0.0
    %1100 = vmatpush1.xpose.msra.mxu0 0.0
    %1101 = vmatprep.subr.mxu0 0.0
    %1102 = vmatpush1.xpose.msra.mxu0 0.0
    %1103 = vmatprep.subr.mxu0 0.0
    %1104 = vmatpush1.xpose.msra.mxu0 0.0
    %1105 = vmatprep.subr.mxu0 0.0
    %1106 = vmatpush1.xpose.msra.mxu0 0.0
    %1107 = vmatprep.subr.mxu0 0.0
    %1108 = vmatpush1.xpose.msra.mxu0 0.0
    %1109 = vmatprep.subr.mxu0 0.0
    %1110 = vmatpush1.xpose.msra.mxu0 0.0
    %1111 = vmatprep.subr.mxu0 0.0
    %1112 = vmatpush1.xpose.msra.mxu0 0.0
    %1113 = vmatprep.subr.mxu0 0.0
    %1114 = vmatpush1.xpose.msra.mxu0 0.0
    %1115 = vmatprep.subr.mxu0 0.0
    %1116 = vmatpush1.xpose.msra.mxu0 0.0
    %1117 = vmatprep.subr.mxu0 0.0
    %1118 = vmatpush1.xpose.msra.mxu0 0.0
    %1119 = vmatprep.subr.mxu0 0.0
    %1120 = vmatpush1.xpose.msra.mxu0 0.0
    %1121 = vmatprep.subr.mxu0 0.0
    %1122 = vmatpush1.xpose.msra.mxu0 0.0
    %1123 = vmatprep.mubr.f32.mxu0 0.0
    %1124 = vmatmul.mubr.f32.gmra.mrb[0].mxu0 %v981
    %v1125 = vpop.f32.mrb[0].mxu0
    %v1126 = vadd.f32 %v1056, %v1125
    %v1127 = vpop.f32.mrb[0].mxu0
    %1128 = vdwg.mxu0
    %vm1129 = vcmask 122880
    %1130 = vst.msk [vmem:[#allocation8] sm:$0x1] %vm1129, %v1126
    // Predicated region
    $region46: #{tpu_custom_call.1} parent=1 // pred_check
      _
    $region47: #{tpu_custom_call.1} parent=1 // pred_check_branch
      %1132 = sbr.rel (0) target = $region49
    $region48: #{tpu_custom_call.1} parent=1 // pred_region
      %s1134 = ssub.s32 16, 16
      %1135 = vsyncadd [#allocation5], %s1134
      %s1137 = sshll.u32 [#allocation8], 4
      %s1138 = int_to_ptr.vmem [resolvable:$true] %s1137
      %1140 = dma.vmem_to_hbm [thread:$0]  %s1138, 16, %s9, [#allocation5]
    $region49: #{tpu_custom_call.1} parent=1 // pred_fallthru
      _
    // Predicated region
    $region50: #{tpu_custom_call.1} parent=1 // pred_check
      _
    $region51: #{tpu_custom_call.1} parent=1 // pred_check_branch
      %1142 = sbr.rel (0) target = $region53
    $region52: #{tpu_custom_call.1} parent=1 // pred_region
      %1143 = dma.done [#allocation5], 16
    $region53: #{tpu_custom_call.1} parent=1 // pred_fallthru
      _
    %1144 = vsyncpa [#allocation4], 1
    %1145 = vsyncpa [#allocation7], 1
    %1146 = vsyncpa [#allocation5], 1

</llo_original>
